<compile_context>
chip_gen: v7x
topology: tpu7x:2x2x1
jax: 0.10.0
libtpu: 0.0.40
codegen_flags: <defaults>
</compile_context>

<pallas_src>
import jax
import jax.numpy as jnp
from jax.experimental import pallas as pl
from jax.experimental.pallas import tpu as pltpu


def channel_mixer_kernel(x_ref, w_ref, o_ref):
    # x_ref: (2, TN, THW) VMEM block (channel-0 / channel-1 planes of this tile)
    # w_ref: (2,) f32 in SMEM (the 1x1-conv weights); o_ref: (TN, THW) block
    w0 = w_ref[0]
    w1 = w_ref[1]
    y = x_ref[0].astype(jnp.float32) * w0 + x_ref[1].astype(jnp.float32) * w1
    o_ref[...] = jnp.maximum(y, 0.0).astype(o_ref.dtype)


def _pick_tiles(N, HW, itemsize):
    """Tile (N, HW) so TN*THW*itemsize <= ~2 MiB.

    Per-step live VMEM ~= 2 buffers * (2*TN*THW input + TN*THW output) * itemsize
    = 6*TN*THW*itemsize <= ~12 MiB on every generation (v5e/v6e/v7x).
    """
    budget_elems = max(128, (2 << 20) // itemsize)
    tn_min = N if N <= 8 else 8          # minimal layout-legal sublane tile
    if tn_min * HW <= budget_elems:
        THW = HW                         # full lane extent (always layout-legal)
        tn = budget_elems // max(HW, 1)
        if tn >= N:
            # Prefer >= 2 batch grid steps so v7x shards across both TensorCores.
            TN = max(8, ((N // 2) // 8) * 8) if N >= 16 else N
        else:
            TN = max(8, (tn // 8) * 8)
    else:
        # Large feature maps: also tile the HW axis (multiple of 128 lanes so
        # stores stay unmasked full-width vst).
        TN = tn_min
        THW = min(HW, max(128, ((budget_elems // TN) // 128) * 128))
    return TN, THW


def channel_mixer(x, weight):
    """x: (N, H, W, 2); weight: Conv2d(2,1,1,bias=False) weight, (1,2,1,1) or (2,).

    Returns (N, H, W, 1), matching ChannelMixer.forward.
    """
    N, H, W, C = x.shape
    assert C == 2, f"ChannelMixer expects 2 trailing channels, got {C}"
    HW = H * W
    itemsize = jnp.dtype(x.dtype).itemsize

    # Single de-interleave pass in XLA: (N, H, W, 2) -> (2, N, HW), lane-dense.
    xc = jnp.moveaxis(x, -1, 0).reshape(2, N, HW)
    w = jnp.asarray(weight, dtype=jnp.float32).reshape(2)

    TN, THW = _pick_tiles(N, HW, itemsize)
    grid = (pl.cdiv(N, TN), pl.cdiv(HW, THW))

    out = pl.pallas_call(
        channel_mixer_kernel,
        out_shape=jax.ShapeDtypeStruct((N, HW), x.dtype),
        grid_spec=pltpu.PrefetchScalarGridSpec(
            num_scalar_prefetch=0,
            grid=grid,
            in_specs=[
                pl.BlockSpec((2, TN, THW), lambda n, hw: (0, n, hw)),
                pl.BlockSpec(memory_space=pltpu.MemorySpace.SMEM),
            ],
            out_specs=pl.BlockSpec((TN, THW), lambda n, hw: (n, hw)),
        ),
        compiler_params=pltpu.CompilerParams(
            dimension_semantics=("parallel", "parallel"),
            vmem_limit_bytes=32 * 1024 * 1024,
        ),
        cost_estimate=pl.CostEstimate(
            flops=4 * N * HW,
            transcendentals=0,
            bytes_accessed=3 * N * HW * itemsize,
        ),
    )(xc, w)
    return out.reshape(N, H, W, 1)


def channel_mixer_ref(x, weight):
    """Pure-JAX reference mirroring the PyTorch module."""
    w = jnp.asarray(weight, dtype=jnp.float32).reshape(2)
    y = x[..., 0].astype(jnp.float32) * w[0] + x[..., 1].astype(jnp.float32) * w[1]
    return jnp.maximum(y, 0.0)[..., None].astype(x.dtype)


if __name__ == "__main__":
    N, H, W = 2, 16, 16

    key = jax.random.PRNGKey(0)
    kx, kw = jax.random.split(key, 2)
    x = jax.random.normal(kx, (N, H, W, 2), dtype=jnp.float32)
    # Conv2d(2, 1, kernel_size=1, bias=False) weight.
    weight = jax.random.normal(kw, (1, 2, 1, 1), dtype=jnp.float32)

    out = channel_mixer(x, weight)
    out = jax.block_until_ready(out)

    ref = channel_mixer_ref(x, weight)
    assert out.shape == (N, H, W, 1), out.shape
    assert jnp.allclose(out, ref, atol=1e-5, rtol=1e-5), "mismatch vs reference"

    print("KERNEL_OK")
</pallas_src>

<mosaic_0001>
module attributes {stable_mosaic.version = 11 : i64} {
  func.func @channel_mixer_kernel(%arg0: i32, %arg1: i32, %arg2: memref<2x2x256xf32, #tpu.memory_space<vmem>>, %arg3: memref<2xf32, #tpu.memory_space<smem>>, %arg4: memref<2x256xf32, #tpu.memory_space<vmem>>) attributes {dimension_semantics = [#tpu.dimension_semantics<parallel>, #tpu.dimension_semantics<parallel>], iteration_bounds = array<i64: 1, 1>, scalar_prefetch = 0 : i64, scratch_operands = 0 : i64, tpu.core_type = #tpu.core_type<tc>, window_params = [{transform_indices = @transform_0, window_bounds = array<i64: 2, 2, 256>}, {transform_indices = @transform_1, window_bounds = array<i64: 2>}, {transform_indices = @transform_2, window_bounds = array<i64: 2, 256>}]} {
    %c0 = arith.constant 0 : index
    %0 = memref.load %arg3[%c0] : memref<2xf32, #tpu.memory_space<smem>>
    %c1 = arith.constant 1 : index
    %1 = memref.load %arg3[%c1] : memref<2xf32, #tpu.memory_space<smem>>
    %c0_0 = arith.constant 0 : index
    %c0_1 = arith.constant 0 : index
    %c0_2 = arith.constant 0 : index
    %2 = vector.load %arg2[%c0_0, %c0_1, %c0_2] : memref<2x2x256xf32, #tpu.memory_space<vmem>>, vector<1x2x256xf32>
    %3 = vector.shape_cast %2 : vector<1x2x256xf32> to vector<2x256xf32>
    %4 = vector.broadcast %0 : f32 to vector<2x256xf32>
    %5 = arith.mulf %3, %4 : vector<2x256xf32>
    %c1_3 = arith.constant 1 : index
    %c0_4 = arith.constant 0 : index
    %c0_5 = arith.constant 0 : index
    %6 = vector.load %arg2[%c1_3, %c0_4, %c0_5] : memref<2x2x256xf32, #tpu.memory_space<vmem>>, vector<1x2x256xf32>
    %7 = vector.shape_cast %6 : vector<1x2x256xf32> to vector<2x256xf32>
    %8 = vector.broadcast %1 : f32 to vector<2x256xf32>
    %9 = arith.mulf %7, %8 : vector<2x256xf32>
    %10 = arith.addf %5, %9 : vector<2x256xf32>
    %cst = arith.constant 0.000000e+00 : f32
    %11 = vector.broadcast %cst : f32 to vector<2x256xf32>
    %12 = arith.maximumf %10, %11 : vector<2x256xf32>
    %c0_6 = arith.constant 0 : index
    %c0_7 = arith.constant 0 : index
    %13 = vector.load %arg4[%c0_6, %c0_7] : memref<2x256xf32, #tpu.memory_space<vmem>>, vector<2x256xf32>
    tpu.vector_store %arg4[%c0_6, %c0_7], %12 {strides = array<i32>} : memref<2x256xf32, #tpu.memory_space<vmem>>, vector<2x256xf32>,
    return
  }
  func.func @transform_0(%arg0: i32, %arg1: i32) -> (i32, i32, i32) {
    %c0_i32 = arith.constant 0 : i32
    %c0_i32_0 = arith.constant 0 : i32
    return %c0_i32, %arg0, %arg1 : i32, i32, i32
  }
  func.func @transform_1(%arg0: i32, %arg1: i32) -> i32 {
    %c0_i32 = arith.constant 0 : i32
    %c0_i32_0 = arith.constant 0 : i32
    return %c0_i32 : i32
  }
  func.func @transform_2(%arg0: i32, %arg1: i32) -> (i32, i32) {
    %c0_i32 = arith.constant 0 : i32
    return %arg0, %arg1 : i32, i32
  }
}

</mosaic_0001>

<llo_original>
// kernel: tpu_custom_call.1
$region0: #{tpu_custom_call.1}
  #allocation0 [shape = 'u32[]', space=smem, size = 0x4, offset = 0x4, fixed_abs, tag = 'smem constant byte address 0x4 - core index']
  #allocation1 [shape = 'u32[144,128]{1,0:T(1,128)}', space=vmem, size = 0x12000, scoped, tag = 'internal scratch']
  %s0 = inlined_call_operand.hbm [shape: f32[2,2,256], index: 0, kind: input, shape index: {}]
  %s1 = inlined_call_operand.vmem [shape: f32[2], index: 1, kind: input, shape index: {}]
  %s2 = inlined_call_operand.hbm [shape: f32[2,256], index: 2, kind: output, shape index: {}]
  %s3 = sld [smem:[#allocation0]]
  $region26: #{tpu_custom_call.1} parent=0
    _
  %s5 = ssub.s32 1, %s3
  %s6 = scalar_select 0, %s5, %s3
  $region1: #{tpu_custom_call.1} parent=0
    #allocation2 [shape = 'u8[4096]{0}', space=vmem, size = 0x1000, scoped, tag = 'input window, operand 0, single buffered']
    #allocation3 [shape = 's32[1]{0}', space=sflag, size = 0x4, scoped, tag = 'scoped memory for tpu_custom_call.1']
    #allocation4 [shape = 's32[1]{0}', space=sflag, size = 0x4, scoped, tag = 'scoped memory for tpu_custom_call.1']
    #allocation5 [shape = 's32[1]{0}', space=sflag, size = 0x4, scoped, tag = 'scoped memory for tpu_custom_call.1']
    #allocation6 [shape = 'u8[512]{0}', space=smem, size = 0x200, scoped, tag = 'input window, operand 1, single buffered']
    #allocation7 [shape = 'u8[2048]{0}', space=vmem, size = 0x800, scoped, tag = 'output window, operand 0, single buffered']
    %7 = vsyncpa [#allocation3], 0
    %8 = vsyncpa [#allocation5], 0
    %9 = vsyncpa [#allocation4], 0
    // Predicated region
    $region2: #{tpu_custom_call.1} parent=1 // pred_check
      _
    $region3: #{tpu_custom_call.1} parent=1 // pred_check_branch
      %11 = sbr.rel (0) target = $region5
    $region4: #{tpu_custom_call.1} parent=1 // pred_region
      %s13 = ssub.s32 128, 128
      %14 = vsyncadd [#allocation3], %s13
      %s15 = sshll.u32 [#allocation2], 4
      %s16 = int_to_ptr.vmem [resolvable:$true] %s15
      %21 = dma.hbm_to_vmem [thread:$0]  %s0, 128, %s16, [#allocation3], 64, 64, 4
    $region5: #{tpu_custom_call.1} parent=1 // pred_fallthru
      _
    // Predicated region
    $region6: #{tpu_custom_call.1} parent=1 // pred_check
      _
    $region7: #{tpu_custom_call.1} parent=1 // pred_check_branch
      %23 = sbr.rel (0) target = $region9
    $region8: #{tpu_custom_call.1} parent=1 // pred_region
      %s25 = ssub.s32 16, 16
      %26 = vsyncadd [#allocation5], %s25
      %s28 = sshll.u32 %s1, 4
      %s29 = int_to_ptr.vmem [resolvable:$true] %s28
      %31 = dma.vmem_to_smem %s29, 16, [#allocation6], [#allocation5]
    $region9: #{tpu_custom_call.1} parent=1 // pred_fallthru
      _
    // Predicated region
    $region10: #{tpu_custom_call.1} parent=1 // pred_check
      _
    $region11: #{tpu_custom_call.1} parent=1 // pred_check_branch
      %33 = sbr.rel (0) target = $region13
    $region12: #{tpu_custom_call.1} parent=1 // pred_region
      %34 = dma.done [#allocation3], 128
    $region13: #{tpu_custom_call.1} parent=1 // pred_fallthru
      _
    // Predicated region
    $region14: #{tpu_custom_call.1} parent=1 // pred_check
      _
    $region15: #{tpu_custom_call.1} parent=1 // pred_check_branch
      %36 = sbr.rel (0) target = $region17
    $region16: #{tpu_custom_call.1} parent=1 // pred_region
      %37 = dma.done [#allocation5], 16
    $region17: #{tpu_custom_call.1} parent=1 // pred_fallthru
      _
    %38 = sfence
    %s39 = sld [smem:[#allocation6]]
    %s40 = sld [smem:[#allocation6 + $0x1]]
    %v41 = vld [vmem:[#allocation2] sm:$0xf]
    %v42 = vstv %s39
    %v43 = vmul.f32 %v41, %v42
    %s44 = scalar_lea.vmem [#allocation2], 4
    %v45 = vld [vmem:[%s44] sm:$0xf]
    %v46 = vstv %s40
    %v47 = vmul.f32 %v45, %v46
    %v48 = vadd.f32 %v43, %v47
    %v49 = vmax.f32 %v48, 0.0
    %50 = vst [vmem:[#allocation7] sm:$0xf] %v49
    // Predicated region
    $region18: #{tpu_custom_call.1} parent=1 // pred_check
      _
    $region19: #{tpu_custom_call.1} parent=1 // pred_check_branch
      %52 = sbr.rel (0) target = $region21
    $region20: #{tpu_custom_call.1} parent=1 // pred_region
      %s54 = ssub.s32 64, 64
      %55 = vsyncadd [#allocation4], %s54
      %s57 = sshll.u32 [#allocation7], 4
      %s58 = int_to_ptr.vmem [resolvable:$true] %s57
      %60 = dma.vmem_to_hbm [thread:$0]  %s58, 64, %s2, [#allocation4]
    $region21: #{tpu_custom_call.1} parent=1 // pred_fallthru
      _
    // Predicated region
    $region22: #{tpu_custom_call.1} parent=1 // pred_check
      _
    $region23: #{tpu_custom_call.1} parent=1 // pred_check_branch
      %62 = sbr.rel (0) target = $region25
    $region24: #{tpu_custom_call.1} parent=1 // pred_region
      %63 = dma.done [#allocation4], 64
    $region25: #{tpu_custom_call.1} parent=1 // pred_fallthru
      _
    %64 = vsyncpa [#allocation3], 1
    %65 = vsyncpa [#allocation4], 1
    %66 = vsyncpa [#allocation5], 1

</llo_original>
